<compile_context>
chip_gen: v7x
topology: tpu7x:2x2x1
jax: 0.10.0
libtpu: 0.0.40
codegen_flags: <defaults>
</compile_context>

<pallas_src>
import functools

import jax
import jax.numpy as jnp
from jax.experimental import pallas as pl
from jax.experimental.pallas import tpu as pltpu


def _pick_block_b(B: int) -> int:
    """Batch rows per grid step: <= 8, divides B, and leaves >= 2 grid steps
    whenever B >= 2 (so both v7x TensorCores get work; no-op on v5e/v6e)."""
    if B <= 1:
        return 1
    for bt in range(min(8, B // 2), 0, -1):
        if B % bt == 0:
            return bt
    return 1


def _location_layer_kernel(x_ref, wf_ref, o_ref, xpad_ref, slab_ref, *,
                           Bt, T, K, pad):
    # x_ref:    (Bt, 2, T)      NCW input rows for this step (unpadded)
    # wf_ref:   (D, 2K)         fused conv+dense weights, column 2k + c
    # o_ref:    (D, Bt*T)       transposed output tile, lane axis = Bt*T
    # xpad_ref: (Bt, 2, Tpad)   VMEM scratch: time-padded copy of x
    # slab_ref: (2K, Bt*T)      VMEM scratch: im2col slab, row 2k+c, col b*T+t

    # Fold the conv zero-padding into the kernel: zero the edge lanes and copy
    # the body once per step.
    if pad > 0:
        zeros_edge = jnp.zeros((Bt, 2, pad), dtype=xpad_ref.dtype)
        xpad_ref[:, :, pl.ds(0, pad)] = zeros_edge
        xpad_ref[:, :, pl.ds(pad + T, pad)] = zeros_edge
    xpad_ref[:, :, pl.ds(pad, T)] = x_ref[...]

    # Build the im2col slab.  K and Bt are small & static -> fully unrolled.
    # Each padded (2, Tpad) row is loaded into registers once per b and sliced
    # K times (lane shifts), with short-lived 2-row stores into the slab.
    for b in range(Bt):
        xb = xpad_ref[b]                               # (2, Tpad) in registers
        for k in range(K):
            slab_ref[pl.ds(2 * k, 2), pl.ds(b * T, T)] = xb[:, k:k + T]

    # One fused MXU matmul for the whole step: (D, 2K) @ (2K, Bt*T).
    out = jnp.dot(wf_ref[...], slab_ref[...],
                  preferred_element_type=jnp.float32)
    o_ref[...] = out.astype(o_ref.dtype)


def location_layer(attention_weights_cat, conv_w, dense_w):
    """attention_weights_cat: [B, 2, T] (torch NCW layout)
    conv_w:  [F, 2, K]  (torch Conv1d weight)
    dense_w: [D, F]     (torch Linear weight)
    returns: [B, T, D]  (same as the torch module)
    """
    B, Cin, T = attention_weights_cat.shape
    assert Cin == 2
    F, _, K = conv_w.shape
    D = dense_w.shape[0]
    assert K % 2 == 1, "even kernel sizes change the conv output length"
    pad = (K - 1) // 2
    Tpad = T + 2 * pad

    dtype = attention_weights_cat.dtype        # bf16 in -> bf16 I/O fast path
    Bt = _pick_block_b(B)
    G = B // Bt
    N = Bt * T                                 # lane width of each output tile

    # Fuse conv + dense weights (exact, no nonlinearity between them):
    #   wf[d, 2k + c] = sum_f dense_w[d, f] * conv_w[f, c, k]
    # Built under the caller's jit so XLA constant-folds it per parameter set.
    wf = jnp.einsum("df,fck->dkc", dense_w, conv_w).reshape(D, 2 * K)
    wf = wf.astype(dtype)

    kernel = functools.partial(_location_layer_kernel, Bt=Bt, T=T, K=K, pad=pad)

    isz = dtype.itemsize
    flops = 2 * B * D * (2 * K) * T
    bytes_accessed = (B * 2 * T + D * 2 * K + B * D * T) * isz

    out_raw = pl.pallas_call(
        kernel,
        out_shape=jax.ShapeDtypeStruct((G, D, N), dtype),
        grid_spec=pltpu.PrefetchScalarGridSpec(
            num_scalar_prefetch=0,
            grid=(G,),
            in_specs=[
                pl.BlockSpec((Bt, 2, T), lambda g: (g, 0, 0)),
                pl.BlockSpec((D, 2 * K), lambda g: (0, 0)),   # grid-invariant
            ],
            out_specs=pl.BlockSpec((None, D, N), lambda g: (g, 0, 0)),
            scratch_shapes=[
                pltpu.VMEM((Bt, 2, Tpad), dtype),
                pltpu.VMEM((2 * K, N), dtype),
            ],
        ),
        compiler_params=pltpu.CompilerParams(
            dimension_semantics=("parallel",)),
        cost_estimate=pl.CostEstimate(
            flops=flops, transcendentals=0, bytes_accessed=bytes_accessed),
    )(attention_weights_cat, wf)

    # (G, D, Bt*T) -> (B, T, D): one fused XLA transpose on a lane-dense slab.
    out = out_raw.reshape(G, D, Bt, T)
    out = jnp.transpose(out, (0, 2, 3, 1)).reshape(B, T, D)
    return out


def _reference(attention_weights_cat, conv_w, dense_w):
    """Pure-JAX reference mirroring the PyTorch module."""
    pad = (conv_w.shape[2] - 1) // 2
    conv_out = jax.lax.conv_general_dilated(
        attention_weights_cat, conv_w,
        window_strides=(1,), padding=[(pad, pad)],
        dimension_numbers=("NCH", "OIH", "NCH"),
    )                                                # (B, F, T)
    proc = jnp.transpose(conv_out, (0, 2, 1))        # (B, T, F)
    return proc @ dense_w.T                          # (B, T, D)


if __name__ == "__main__":
    # Small, Tacotron-flavored shapes.
    B, T = 2, 16
    attention_n_filters = 8
    attention_kernel_size = 5
    attention_dim = 32

    key = jax.random.PRNGKey(0)
    k1, k2, k3 = jax.random.split(key, 3)

    attention_weights_cat = jax.random.normal(k1, (B, 2, T), dtype=jnp.float32)
    # Deterministic synthetic params (shapes from the module __init__).
    conv_w = 0.1 * jax.random.normal(
        k2, (attention_n_filters, 2, attention_kernel_size), dtype=jnp.float32)
    dense_w = 0.1 * jax.random.normal(
        k3, (attention_dim, attention_n_filters), dtype=jnp.float32)

    loc = jax.jit(location_layer)   # weight fusion folds under the same jit
    out = jax.block_until_ready(loc(attention_weights_cat, conv_w, dense_w))

    ref = _reference(attention_weights_cat, conv_w, dense_w)
    assert out.shape == (B, T, attention_dim)
    assert jnp.allclose(out, ref, atol=1e-4, rtol=1e-4), "mismatch vs reference"

    print("KERNEL_OK")
</pallas_src>

<mosaic_0001>
module attributes {stable_mosaic.version = 11 : i64} {
  func.func @_location_layer_kernel(%arg0: i32, %arg1: memref<1x2x16xf32, #tpu.memory_space<vmem>>, %arg2: memref<32x10xf32, #tpu.memory_space<vmem>>, %arg3: memref<1x32x16xf32, #tpu.memory_space<vmem>>, %arg4: memref<1x2x20xf32, #tpu.memory_space<vmem>>, %arg5: memref<10x16xf32, #tpu.memory_space<vmem>>) attributes {dimension_semantics = [#tpu.dimension_semantics<parallel>], iteration_bounds = array<i64: 2>, scalar_prefetch = 0 : i64, scratch_operands = 2 : i64, tpu.core_type = #tpu.core_type<tc>, window_params = [{transform_indices = @transform_0, window_bounds = array<i64: 1, 2, 16>}, {pipeline_mode = #tpu.pipeline_mode<synchronous>, transform_indices = @transform_1, window_bounds = array<i64: 32, 10>}, {transform_indices = @transform_2, window_bounds = array<i64: 1, 32, 16>}]} {
    %cst = arith.constant 0.000000e+00 : f32
    %0 = vector.broadcast %cst : f32 to vector<1x2x2xf32>
    %c0 = arith.constant 0 : index
    %c0_0 = arith.constant 0 : index
    %c0_1 = arith.constant 0 : index
    %1 = vector.load %arg4[%c0, %c0_0, %c0_1] : memref<1x2x20xf32, #tpu.memory_space<vmem>>, vector<1x2x2xf32>
    tpu.vector_store %arg4[%c0, %c0_0, %c0_1], %0 {strides = array<i32>} : memref<1x2x20xf32, #tpu.memory_space<vmem>>, vector<1x2x2xf32>,
    %c0_2 = arith.constant 0 : index
    %c0_3 = arith.constant 0 : index
    %c18 = arith.constant 18 : index
    %2 = vector.load %arg4[%c0_2, %c0_3, %c18] : memref<1x2x20xf32, #tpu.memory_space<vmem>>, vector<1x2x2xf32>
    tpu.vector_store %arg4[%c0_2, %c0_3, %c18], %0 {strides = array<i32>} : memref<1x2x20xf32, #tpu.memory_space<vmem>>, vector<1x2x2xf32>,
    %c0_4 = arith.constant 0 : index
    %c0_5 = arith.constant 0 : index
    %c0_6 = arith.constant 0 : index
    %3 = vector.load %arg1[%c0_4, %c0_5, %c0_6] : memref<1x2x16xf32, #tpu.memory_space<vmem>>, vector<1x2x16xf32>
    %c0_7 = arith.constant 0 : index
    %c0_8 = arith.constant 0 : index
    %c2 = arith.constant 2 : index
    %4 = vector.load %arg4[%c0_7, %c0_8, %c2] : memref<1x2x20xf32, #tpu.memory_space<vmem>>, vector<1x2x16xf32>
    tpu.vector_store %arg4[%c0_7, %c0_8, %c2], %3 {strides = array<i32>} : memref<1x2x20xf32, #tpu.memory_space<vmem>>, vector<1x2x16xf32>,
    %c0_9 = arith.constant 0 : index
    %c0_10 = arith.constant 0 : index
    %c0_11 = arith.constant 0 : index
    %5 = vector.load %arg4[%c0_9, %c0_10, %c0_11] : memref<1x2x20xf32, #tpu.memory_space<vmem>>, vector<1x2x20xf32>
    %6 = vector.shape_cast %5 : vector<1x2x20xf32> to vector<2x20xf32>
    %7 = vector.extract_strided_slice %6 {offsets = [0, 0], sizes = [2, 16], strides = [1, 1]} : vector<2x20xf32> to vector<2x16xf32>
    %c0_12 = arith.constant 0 : index
    %c0_13 = arith.constant 0 : index
    %8 = vector.load %arg5[%c0_12, %c0_13] : memref<10x16xf32, #tpu.memory_space<vmem>>, vector<2x16xf32>
    tpu.vector_store %arg5[%c0_12, %c0_13], %7 {strides = array<i32>} : memref<10x16xf32, #tpu.memory_space<vmem>>, vector<2x16xf32>,
    %9 = vector.extract_strided_slice %6 {offsets = [0, 1], sizes = [2, 16], strides = [1, 1]} : vector<2x20xf32> to vector<2x16xf32>
    %c2_14 = arith.constant 2 : index
    %c0_15 = arith.constant 0 : index
    %10 = vector.load %arg5[%c2_14, %c0_15] : memref<10x16xf32, #tpu.memory_space<vmem>>, vector<2x16xf32>
    tpu.vector_store %arg5[%c2_14, %c0_15], %9 {strides = array<i32>} : memref<10x16xf32, #tpu.memory_space<vmem>>, vector<2x16xf32>,
    %11 = vector.extract_strided_slice %6 {offsets = [0, 2], sizes = [2, 16], strides = [1, 1]} : vector<2x20xf32> to vector<2x16xf32>
    %c4 = arith.constant 4 : index
    %c0_16 = arith.constant 0 : index
    %12 = vector.load %arg5[%c4, %c0_16] : memref<10x16xf32, #tpu.memory_space<vmem>>, vector<2x16xf32>
    tpu.vector_store %arg5[%c4, %c0_16], %11 {strides = array<i32>} : memref<10x16xf32, #tpu.memory_space<vmem>>, vector<2x16xf32>,
    %13 = vector.extract_strided_slice %6 {offsets = [0, 3], sizes = [2, 16], strides = [1, 1]} : vector<2x20xf32> to vector<2x16xf32>
    %c6 = arith.constant 6 : index
    %c0_17 = arith.constant 0 : index
    %14 = vector.load %arg5[%c6, %c0_17] : memref<10x16xf32, #tpu.memory_space<vmem>>, vector<2x16xf32>
    tpu.vector_store %arg5[%c6, %c0_17], %13 {strides = array<i32>} : memref<10x16xf32, #tpu.memory_space<vmem>>, vector<2x16xf32>,
    %15 = vector.extract_strided_slice %6 {offsets = [0, 4], sizes = [2, 16], strides = [1, 1]} : vector<2x20xf32> to vector<2x16xf32>
    %c8 = arith.constant 8 : index
    %c0_18 = arith.constant 0 : index
    %16 = vector.load %arg5[%c8, %c0_18] : memref<10x16xf32, #tpu.memory_space<vmem>>, vector<2x16xf32>
    tpu.vector_store %arg5[%c8, %c0_18], %15 {strides = array<i32>} : memref<10x16xf32, #tpu.memory_space<vmem>>, vector<2x16xf32>,
    %c0_19 = arith.constant 0 : index
    %c0_20 = arith.constant 0 : index
    %17 = vector.load %arg2[%c0_19, %c0_20] : memref<32x10xf32, #tpu.memory_space<vmem>>, vector<32x10xf32>
    %c0_21 = arith.constant 0 : index
    %c0_22 = arith.constant 0 : index
    %18 = vector.load %arg5[%c0_21, %c0_22] : memref<10x16xf32, #tpu.memory_space<vmem>>, vector<10x16xf32>
    %cst_23 = arith.constant dense<0.000000e+00> : vector<32x16xf32>
    %19 = tpu.matmul %17, %18, %cst_23 {dimension_numbers = #tpu.dot_dimension_numbers<[1], [0], [0], [1], [0, 0, 1, 1], [], []>} : vector<32x10xf32>, vector<10x16xf32>, vector<32x16xf32> -> vector<32x16xf32>
    %c0_24 = arith.constant 0 : index
    %c0_25 = arith.constant 0 : index
    %c0_26 = arith.constant 0 : index
    %20 = vector.load %arg3[%c0_24, %c0_25, %c0_26] : memref<1x32x16xf32, #tpu.memory_space<vmem>>, vector<1x32x16xf32>
    %21 = vector.shape_cast %20 : vector<1x32x16xf32> to vector<32x16xf32>
    %22 = vector.shape_cast %19 : vector<32x16xf32> to vector<1x32x16xf32>
    tpu.vector_store %arg3[%c0_24, %c0_25, %c0_26], %22 {strides = array<i32>} : memref<1x32x16xf32, #tpu.memory_space<vmem>>, vector<1x32x16xf32>,
    return
  }
  func.func @transform_0(%arg0: i32) -> (i32, i32, i32) {
    %c0_i32 = arith.constant 0 : i32
    %c0_i32_0 = arith.constant 0 : i32
    %c0_i32_1 = arith.constant 0 : i32
    return %arg0, %c0_i32, %c0_i32_0 : i32, i32, i32
  }
  func.func @transform_1(%arg0: i32) -> (i32, i32) {
    %c0_i32 = arith.constant 0 : i32
    %c0_i32_0 = arith.constant 0 : i32
    %c0_i32_1 = arith.constant 0 : i32
    return %c0_i32, %c0_i32_0 : i32, i32
  }
  func.func @transform_2(%arg0: i32) -> (i32, i32, i32) {
    %c0_i32 = arith.constant 0 : i32
    %c0_i32_0 = arith.constant 0 : i32
    %c0_i32_1 = arith.constant 0 : i32
    return %arg0, %c0_i32, %c0_i32_0 : i32, i32, i32
  }
}

</mosaic_0001>

<llo_original>
// kernel: location_layer.1
$region0: #{location_layer.1}
  #allocation0 [shape = 'u32[]', space=smem, size = 0x4, offset = 0x4, fixed_abs, tag = 'smem constant byte address 0x4 - core index']
  #allocation1 [shape = 'u32[144,128]{1,0:T(1,128)}', space=vmem, size = 0x12000, scoped, tag = 'internal scratch']
  #allocation2 [shape = 'f32[1,2,20]{2,1,0:T(2,128)}', space=vmem, size = 0x400, scoped, tag = 'scratch operand']
  #allocation3 [shape = 'f32[10,16]{1,0:T(8,128)}', space=vmem, size = 0x2000, scoped, tag = 'scratch operand']
  %s0 = inlined_call_operand.vmem [shape: f32[2,2,16], index: 0, kind: input, shape index: {}]
  %s1 = inlined_call_operand.vmem [shape: f32[32,10], index: 1, kind: input, shape index: {}]
  %s2 = inlined_call_operand.vmem [shape: f32[2,32,16], index: 2, kind: output, shape index: {}]
  %s3 = sld [smem:[#allocation0]]
  $region41: #{location_layer.1} parent=0
    _
  %s5 = ssub.s32 1, %s3
  %s6 = scalar_select 0, %s5, %s3
  loop: start=0, step=1, limit=4
  $region2: #{location_layer.1} parent=0 // loop_pre_header
    _
  $region3: #{location_layer.1} parent=0 // loop_header
    %s8 = sphi 0, %s12
    %p9 = scmp.ge.s32.totalorder %s8, 4
    %s18 = sphi 0, %s20
    %s21 = sphi 0, %s18
    %s22 = sphi 0, %s21
    %s38 = sphi 0, %s22
    %s42 = sphi 0, %s42
    %s44 = sphi 0, %s42
    %s45 = sphi 0, %s44
    %s59 = sphi 0, %s45
    %s65 = sphi 0, %s67
    %s68 = sphi 0, %s65
    %s69 = sphi 0, %s68
    %s85 = sphi 0, %s69
  $region4: #{location_layer.1} parent=0 // loop_header_branch
    %11 = sbr.rel (%p9) target = $region8
  $region5: #{location_layer.1} parent=0 // loop_body
    %s13 = ssub.s32 %s8, 1
    %s14 = ssub.s32 %s8, 2
    %s15 = sadd.s32 %s8, 1
    %s16 = ssub.s32 %s8, %s15
    %p17 = scmp.eq.s32.totalorder %s16, 0
    %s19 = sadd.s32 %s18, 1
    %s20 = scalar_select %p17, %s18, %s19
    %p23 = pneg %p17
    %p24 = scmp.eq.s32.totalorder %s8, 1
    %p25 = por %p23, %p24
    %p26 = scmp.ne.s32.totalorder %s18, %s21
    %p27 = scmp.eq.s32.totalorder %s8, 0
    %p28 = por %p26, %p27
    %p29 = scmp.ne.s32.totalorder %s18, %s21
    %p30 = scmp.eq.s32.totalorder %s13, 1
    %p31 = por %p29, %p30
    %p32 = scmp.ne.s32.totalorder %s21, %s22
    %p33 = scmp.eq.s32.totalorder %s13, 0
    %p34 = por %p32, %p33
    %p35 = scmp.ne.s32.totalorder %s21, %s22
    %p36 = scmp.eq.s32.totalorder %s14, 1
    %p37 = por %p35, %p36
    %p39 = scmp.ne.s32.totalorder %s22, %s38
    %p40 = scmp.eq.s32.totalorder %s14, 0
    %p41 = por %p39, %p40
    %s43 = sadd.s32 %s42, 1
    %p46 = scmp.eq.s32.totalorder %s8, 1
    %p47 = scmp.ne.s32.totalorder %s42, %s44
    %p48 = scmp.eq.s32.totalorder %s8, 0
    %p49 = por %p47, %p48
    %p50 = scmp.ne.s32.totalorder %s42, %s44
    %p51 = scmp.eq.s32.totalorder %s13, 1
    %p52 = por %p50, %p51
    %p53 = scmp.ne.s32.totalorder %s44, %s45
    %p54 = scmp.eq.s32.totalorder %s13, 0
    %p55 = por %p53, %p54
    %p56 = scmp.ne.s32.totalorder %s44, %s45
    %p57 = scmp.eq.s32.totalorder %s14, 1
    %p58 = por %p56, %p57
    %p60 = scmp.ne.s32.totalorder %s45, %s59
    %p61 = scmp.eq.s32.totalorder %s14, 0
    %p62 = por %p60, %p61
    %s63 = ssub.s32 %s8, %s15
    %p64 = scmp.eq.s32.totalorder %s63, 0
    %s66 = sadd.s32 %s65, 1
    %s67 = scalar_select %p64, %s65, %s66
    %p70 = pneg %p64
    %p71 = scmp.eq.s32.totalorder %s8, 1
    %p72 = por %p70, %p71
    %p73 = scmp.ne.s32.totalorder %s65, %s68
    %p74 = scmp.eq.s32.totalorder %s8, 0
    %p75 = por %p73, %p74
    %p76 = scmp.ne.s32.totalorder %s65, %s68
    %p77 = scmp.eq.s32.totalorder %s13, 1
    %p78 = por %p76, %p77
    %p79 = scmp.ne.s32.totalorder %s68, %s69
    %p80 = scmp.eq.s32.totalorder %s13, 0
    %p81 = por %p79, %p80
    %p82 = scmp.ne.s32.totalorder %s68, %s69
    %p83 = scmp.eq.s32.totalorder %s14, 1
    %p84 = por %p82, %p83
    %p86 = scmp.ne.s32.totalorder %s69, %s85
    %p87 = scmp.eq.s32.totalorder %s14, 0
    %p88 = por %p86, %p87
    %p89 = scmp.le.s32.totalorder 1, %s8
    %p90 = scmp.lt.s32.totalorder %s8, 3
    %p91 = pnand %p89, %p90
    %p92 = pneg %p91
    // Predicated region
    $region9: #{location_layer.1} parent=5 // pred_check
      _
    $region10: #{location_layer.1} parent=5 // pred_check_branch
      %94 = sbr.rel (%p91) target = $region12
    $region11: #{location_layer.1} parent=5 // pred_region
      %s95 = ssub.s32 %s8, 1
      // Predicated region
      $region13: #{location_layer.1} parent=11 // pred_check
        %p96 = pneg %p55
      $region14: #{location_layer.1} parent=11 // pred_check_branch
        %98 = sbr.rel (%p96) target = $region16
      $region15: #{location_layer.1} parent=11 // pred_region
        _
      $region16: #{location_layer.1} parent=11 // pred_fallthru
        _
    $region12: #{location_layer.1} parent=5 // pred_fallthru
      _
    %p99 = scmp.lt.s32.totalorder %s8, 2
    // Predicated region
    $region17: #{location_layer.1} parent=5 // pred_check
      %p100 = pneg %p99
    $region18: #{location_layer.1} parent=5 // pred_check_branch
      %102 = sbr.rel (%p100) target = $region20
    $region19: #{location_layer.1} parent=5 // pred_region
      // Predicated region
      $region21: #{location_layer.1} parent=19 // pred_check
        %p103 = pneg %p28
      $region22: #{location_layer.1} parent=19 // pred_check_branch
        %105 = sbr.rel (%p103) target = $region24
      $region23: #{location_layer.1} parent=19 // pred_region
        %p106 = scmp.lt.s32.totalorder %s8, 1
        %s107 = scalar_select %p106, %s8, 1
        %s108 = smul.addr %s107, 2
        %s109 = scalar_lea.vmem %s0, %s108
      $region24: #{location_layer.1} parent=19 // pred_fallthru
        _
    $region20: #{location_layer.1} parent=5 // pred_fallthru
      _
    %p110 = scmp.le.s32.totalorder 1, %s8
    %p111 = scmp.lt.s32.totalorder %s8, 3
    %p112 = pnand %p110, %p111
    %p113 = pneg %p112
    // Predicated region
    $region25: #{location_layer.1} parent=5 // pred_check
      _
    $region26: #{location_layer.1} parent=5 // pred_check_branch
      %115 = sbr.rel (%p112) target = $region28
    $region27: #{location_layer.1} parent=5 // pred_region
      %s116 = ssub.s32 %s8, 1
      %p117 = scmp.lt.s32.totalorder %s13, 1
      %s118 = scalar_select %p117, %s13, 1
      %s119 = smul.addr %s118, 2
      %s120 = scalar_lea.vmem %s0, %s119
      %p121 = pneg %p34
      %p122 = pneg %p31
      %p123 = pneg %p55
      %p124 = pneg %p52
      %p125 = pneg %p81
      %p126 = pneg %p78
      %p127 = scmp.lt.s32.totalorder %s13, 1
      %s128 = scalar_select %p127, %s13, 1
      %s129 = smul.addr %s128, 4
      %s130 = smul.addr %s129, 8
      %s131 = scalar_lea.vmem %s2, %s130
      %p132 = scmp.lt.s32.totalorder %s13, 1
      %s133 = scalar_select %p132, %s13, 1
      %s134 = smul.addr %s133, 2
      %s135 = scalar_lea.vmem %s0, %s134
      %p136 = scmp.lt.s32.totalorder %s13, 1
      %s137 = scalar_select %p136, %s13, 1
      %s138 = smul.addr %s137, 4
      %s139 = smul.addr %s138, 8
      %s140 = scalar_lea.vmem %s2, %s139
      %vm141 = vcmask 9216
      %142 = vst.msk [vmem:[#allocation2] sm:$0x3] %vm141, 0.0
      %vm143 = vcmask 156816
      %144 = vst.msk [vmem:[#allocation2] sm:$0x3] %vm143, 0.0
      %v145 = vld [vmem:[%s135] sm:$0x3]
      %147 = vrot.lane.b32.xlu0 %v145, 2
      %v148 = vpop.permute.xlu0 %147
      %vm150 = vcmask 140304
      %151 = vst.msk [vmem:[#allocation2] sm:$0x3] %vm150, %v148
      %v152 = vld [vmem:[#allocation2] sm:$0x3]
      %vm153 = vcmask 123904
      %154 = vst.msk [vmem:[#allocation3] sm:$0x3] %vm153, %v152
      %156 = vrot.lane.b32.xlu0 %v152, 127
      %v157 = vpop.permute.xlu0 %156
      %159 = vst.msk [vmem:[#allocation3 + $0x2] sm:$0x3] %vm153, %v157
      %160 = vrot.lane.b32.xlu0 %v152, 126
      %v161 = vpop.permute.xlu0 %160
      %163 = vst.msk [vmem:[#allocation3 + $0x4] sm:$0x3] %vm153, %v161
      %164 = vrot.lane.b32.xlu0 %v152, 125
      %v165 = vpop.permute.xlu0 %164
      %167 = vst.msk [vmem:[#allocation3 + $0x6] sm:$0x3] %vm153, %v165
      %168 = vrot.lane.b32.xlu0 %v152, 124
      %v169 = vpop.permute.xlu0 %168
      %171 = vst.msk [vmem:[#allocation3 + $0x8] sm:$0x3] %vm153, %v169
      %v172 = vld [vmem:[%s1] sm:$0xff]
      %v173 = vld [vmem:[%s1 + $0x8] sm:$0xff]
      %v174 = vld [vmem:[%s1 + $0x10] sm:$0xff]
      %v175 = vld [vmem:[%s1 + $0x18] sm:$0xff]
      %v176 = vld [vmem:[#allocation3] sm:$0xff]
      %v177 = vld [vmem:[#allocation3 + $0x8] sm:$0x3]
      %vm178 = vcmask 80896
      %v180 = vsel %vm178, %v172, 0
      %v183 = vsel %vm178, %v173, 0
      %v186 = vsel %vm178, %v174, 0
      %v189 = vsel %vm178, %v175, 0
      %vm191 = vcmask 1041408
      %v193 = vsel %vm191, %v177, 0
      %195 = vmatprep.subr.mxu0 0.0
      %196 = vmatpush1.msra.mxu0 %v176
      %197 = vmatprep.subr.mxu0 0.0
      %198 = vmatpush1.msra.mxu0 %v193
      %199 = vmatprep.subr.mxu0 0.0
      %200 = vmatpush1.msra.mxu0 0.0
      %201 = vmatprep.subr.mxu0 0.0
      %202 = vmatpush1.msra.mxu0 0.0
      %203 = vmatprep.subr.mxu0 0.0
      %204 = vmatpush1.msra.mxu0 0.0
      %205 = vmatprep.subr.mxu0 0.0
      %206 = vmatpush1.msra.mxu0 0.0
      %207 = vmatprep.subr.mxu0 0.0
      %208 = vmatpush1.msra.mxu0 0.0
      %209 = vmatprep.subr.mxu0 0.0
      %210 = vmatpush1.msra.mxu0 0.0
      %211 = vmatprep.subr.mxu0 0.0
      %212 = vmatpush1.msra.mxu0 0.0
      %213 = vmatprep.subr.mxu0 0.0
      %214 = vmatpush1.msra.mxu0 0.0
      %215 = vmatprep.subr.mxu0 0.0
      %216 = vmatpush1.msra.mxu0 0.0
      %217 = vmatprep.subr.mxu0 0.0
      %218 = vmatpush1.msra.mxu0 0.0
      %219 = vmatprep.subr.mxu0 0.0
      %220 = vmatpush1.msra.mxu0 0.0
      %221 = vmatprep.subr.mxu0 0.0
      %222 = vmatpush1.msra.mxu0 0.0
      %223 = vmatprep.subr.mxu0 0.0
      %224 = vmatpush1.msra.mxu0 0.0
      %225 = vmatprep.subr.mxu0 0.0
      %226 = vmatpush1.msra.mxu0 0.0
      %227 = vmatprep.subr.mxu0 0.0
      %228 = vmatpush1.msra.mxu0 0.0
      %229 = vmatprep.subr.mxu0 0.0
      %230 = vmatpush1.msra.mxu0 0.0
      %231 = vmatprep.subr.mxu0 0.0
      %232 = vmatpush1.msra.mxu0 0.0
      %233 = vmatprep.subr.mxu0 0.0
      %234 = vmatpush1.msra.mxu0 0.0
      %235 = vmatprep.subr.mxu0 0.0
      %236 = vmatpush1.msra.mxu0 0.0
      %237 = vmatprep.subr.mxu0 0.0
      %238 = vmatpush1.msra.mxu0 0.0
      %239 = vmatprep.subr.mxu0 0.0
      %240 = vmatpush1.msra.mxu0 0.0
      %241 = vmatprep.subr.mxu0 0.0
      %242 = vmatpush1.msra.mxu0 0.0
      %243 = vmatprep.subr.mxu0 0.0
      %244 = vmatpush1.msra.mxu0 0.0
      %245 = vmatprep.subr.mxu0 0.0
      %246 = vmatpush1.msra.mxu0 0.0
      %247 = vmatprep.subr.mxu0 0.0
      %248 = vmatpush1.msra.mxu0 0.0
      %249 = vmatprep.subr.mxu0 0.0
      %250 = vmatpush1.msra.mxu0 0.0
      %251 = vmatprep.subr.mxu0 0.0
      %252 = vmatpush1.msra.mxu0 0.0
      %253 = vmatprep.subr.mxu0 0.0
      %254 = vmatpush1.msra.mxu0 0.0
      %255 = vmatprep.subr.mxu0 0.0
      %256 = vmatpush1.msra.mxu0 0.0
      %257 = vmatprep.subr.mxu0 0.0
      %258 = vmatpush1.msra.mxu0 0.0
      %259 = vmatprep.mubr.f32.mxu0 0.0
      %260 = vmatmul.mubr.f32.gmra.mrb[0].mxu0 %v180
      %v261 = vpop.f32.mrb[0].mxu0
      %v262 = vadd.f32 0.0, %v261
      %v263 = vpop.f32.mrb[0].mxu0
      %264 = vmatprep.mubr.f32.mxu0 0.0
      %265 = vmatmul.mubr.f32.gmra.mrb[0].mxu0 %v183
      %v266 = vpop.f32.mrb[0].mxu0
      %v267 = vadd.f32 0.0, %v266
      %v268 = vpop.f32.mrb[0].mxu0
      %269 = vmatprep.mubr.f32.mxu0 0.0
      %270 = vmatmul.mubr.f32.gmra.mrb[0].mxu0 %v186
      %v271 = vpop.f32.mrb[0].mxu0
      %v272 = vadd.f32 0.0, %v271
      %v273 = vpop.f32.mrb[0].mxu0
      %274 = vmatprep.mubr.f32.mxu0 0.0
      %275 = vmatmul.mubr.f32.gmra.mrb[0].mxu0 %v189
      %v276 = vpop.f32.mrb[0].mxu0
      %v277 = vadd.f32 0.0, %v276
      %v278 = vpop.f32.mrb[0].mxu0
      %279 = vdwg.mxu0
      %vm280 = vcmask 130048
      %281 = vst.msk [vmem:[%s140] sm:$0xff] %vm280, %v262
      %282 = vst.msk [vmem:[%s140 + $0x8] sm:$0xff] %vm280, %v267
      %283 = vst.msk [vmem:[%s140 + $0x10] sm:$0xff] %vm280, %v272
      %284 = vst.msk [vmem:[%s140 + $0x18] sm:$0xff] %vm280, %v277
      %p285 = scmp.lt.s32.totalorder %s13, 1
      %s286 = scalar_select %p285, %s13, 1
      %s287 = smul.addr %s286, 4
      %s288 = smul.addr %s287, 8
      %s289 = scalar_lea.vmem %s2, %s288
      // Predicated region
      $region29: #{location_layer.1} parent=27 // pred_check
        %p290 = pneg %p78
      $region30: #{location_layer.1} parent=27 // pred_check_branch
        %292 = sbr.rel (%p290) target = $region32
      $region31: #{location_layer.1} parent=27 // pred_region
        _
      $region32: #{location_layer.1} parent=27 // pred_fallthru
        _
    $region28: #{location_layer.1} parent=5 // pred_fallthru
      _
    %p293 = scmp.le.s32.totalorder 2, %s8
    // Predicated region
    $region33: #{location_layer.1} parent=5 // pred_check
      %p294 = pneg %p293
    $region34: #{location_layer.1} parent=5 // pred_check_branch
      %296 = sbr.rel (%p294) target = $region36
    $region35: #{location_layer.1} parent=5 // pred_region
      %s297 = ssub.s32 %s8, 2
      // Predicated region
      $region37: #{location_layer.1} parent=35 // pred_check
        %p298 = pneg %p84
      $region38: #{location_layer.1} parent=35 // pred_check_branch
        %300 = sbr.rel (%p298) target = $region40
      $region39: #{location_layer.1} parent=35 // pred_region
        %p301 = scmp.lt.s32.totalorder %s14, 1
        %s302 = scalar_select %p301, %s14, 1
        %s303 = smul.addr %s302, 4
        %s304 = smul.addr %s303, 8
        %s305 = scalar_lea.vmem %s2, %s304
      $region40: #{location_layer.1} parent=35 // pred_fallthru
        _
    $region36: #{location_layer.1} parent=5 // pred_fallthru
      _
  $region6: #{location_layer.1} parent=0 // loop_footer
    %s12 = sadd.s32 1, %s8
  $region7: #{location_layer.1} parent=0 // loop_footer_branch
    %7 = sbr.rel target = $region3
  $region8: #{location_layer.1} parent=0 // loop_exit
    _

</llo_original>
